<compile_context>
chip_gen: v7x
topology: tpu7x:2x2x1
jax: 0.10.0
libtpu: 0.0.40
codegen_flags: <defaults>
</compile_context>

<pallas_src>
import numpy as np
import jax
import jax.numpy as jnp
from jax.experimental import pallas as pl
from jax.experimental.pallas import tpu as pltpu

N = 64          # grid resolution (np.linspace(-1, 1, 64))
M_MASS = 0.15
G_GRAV = 9.81
L_LEN = 0.5
CONTROL_GAIN = 5.0


def pendulum_f2_kernel(phi_ref, x_row_ref, yy_slab_ref, base_ref, f2_ref):
    # phi_ref:     SMEM (2,)  f32 scalars [phi1, phi2]
    # x_row_ref:   VMEM (1, 128)  f32   x[c % 64]          (column values, lane vector)
    # yy_slab_ref: VMEM (32, 128) f32   yy reshaped row-major to the lane-dense slab
    # base_ref:    VMEM (32, 128) f32   phi-independent part of f2 (precomputed)
    # f2_ref:      VMEM (32, 128) f32   output slab
    phi1 = phi_ref[0]
    phi2 = phi_ref[1]

    # Rank-1 column term: 128 tanh evals instead of 4096, sublane-broadcast below.
    tx = jnp.tanh(phi1 * x_row_ref[...])          # (1, 128)
    ty = jnp.tanh(phi2 * yy_slab_ref[...])        # (32, 128)

    scale = CONTROL_GAIN / (M_MASS * L_LEN * L_LEN)   # 5 / (m*l^2), Python constant
    f2_ref[...] = base_ref[...] + scale * (tx + ty)


def make_pendulum_buffers():
    """Constant buffers equivalent to the module's __init__ (precomputed once)."""
    xs = np.linspace(-1.0, 1.0, N).astype(np.float32)
    xx_np, yy_np = np.meshgrid(xs, xs)            # default indexing='xy', as in the module
    xx = jnp.asarray(xx_np, dtype=jnp.float32)    # xx[i, j] = x[j]
    yy = jnp.asarray(yy_np, dtype=jnp.float32)    # yy[i, j] = y[i]

    inv_ml2 = 1.0 / (M_MASS * L_LEN * L_LEN)
    # phi-independent part of f2: g*sin(xx)/l - 0.1*yy/(m*l^2)
    base = G_GRAV * jnp.sin(xx) / L_LEN - 0.1 * inv_ml2 * yy

    x_row = jnp.tile(jnp.asarray(xs, dtype=jnp.float32), 2).reshape(1, 2 * N)  # x[c % 64]

    return dict(
        xx=xx,
        yy=yy,
        x_row=x_row,                               # (1, 128)
        yy_slab=yy.reshape(N // 2, 2 * N),         # (32, 128), row-major == yy
        base_slab=base.reshape(N // 2, 2 * N),     # (32, 128)
    )


def pendulum_forward(phi, V, bufs):
    """phi: (2,) f32 [phi1, phi2]; V: (64, 64) f32 -> (3, 64, 64) f32."""
    f2_slab = pl.pallas_call(
        pendulum_f2_kernel,
        out_shape=jax.ShapeDtypeStruct((N // 2, 2 * N), jnp.float32),
        in_specs=[
            pl.BlockSpec(memory_space=pltpu.SMEM),            # phi scalars
            pl.BlockSpec((1, 2 * N), lambda: (0, 0)),          # x_row
            pl.BlockSpec((N // 2, 2 * N), lambda: (0, 0)),     # yy slab
            pl.BlockSpec((N // 2, 2 * N), lambda: (0, 0)),     # base slab
        ],
        out_specs=pl.BlockSpec((N // 2, 2 * N), lambda: (0, 0)),
    )(phi, bufs["x_row"], bufs["yy_slab"], bufs["base_slab"])

    f2 = f2_slab.reshape(N, N)   # free row-major reshape back to (64, 64)
    # f1 is exactly yy and plane 2 is exactly V: assembled outside the kernel
    # so no pure-copy planes are routed through VMEM/HBM twice.
    return jnp.stack((bufs["yy"], f2, V))


def reference_forward(phi, V, xx, yy):
    control = CONTROL_GAIN * jnp.tanh(phi[0] * xx) + CONTROL_GAIN * jnp.tanh(phi[1] * yy)
    f1 = yy
    f2 = G_GRAV * jnp.sin(xx) / L_LEN + (control - 0.1 * yy) / (M_MASS * L_LEN * L_LEN)
    return jnp.stack((f1, f2, V))


if __name__ == "__main__":
    bufs = make_pendulum_buffers()

    # Deterministic parameter / input init (stand-in for torch.randn(())).
    key = jax.random.PRNGKey(0)
    k_phi, k_v = jax.random.split(key)
    phi = jax.random.normal(k_phi, (2,), dtype=jnp.float32)     # [phi1, phi2]
    V = jax.random.normal(k_v, (N, N), dtype=jnp.float32)

    out = jax.block_until_ready(pendulum_forward(phi, V, bufs))

    ref = reference_forward(phi, V, bufs["xx"], bufs["yy"])
    np.testing.assert_allclose(np.asarray(out), np.asarray(ref),
                               rtol=1e-5, atol=1e-4)

    print("KERNEL_OK")
</pallas_src>

<mosaic_0001>
module attributes {stable_mosaic.version = 11 : i64} {
  func.func @pendulum_f2_kernel(%arg0: memref<2xf32, #tpu.memory_space<smem>>, %arg1: memref<1x128xf32, #tpu.memory_space<vmem>>, %arg2: memref<32x128xf32, #tpu.memory_space<vmem>>, %arg3: memref<32x128xf32, #tpu.memory_space<vmem>>, %arg4: memref<32x128xf32, #tpu.memory_space<vmem>>) attributes {dimension_semantics = [], scalar_prefetch = 0 : i64, scratch_operands = 0 : i64, tpu.core_type = #tpu.core_type<tc>} {
    %c0 = arith.constant 0 : index
    %0 = memref.load %arg0[%c0] : memref<2xf32, #tpu.memory_space<smem>>
    %c1 = arith.constant 1 : index
    %1 = memref.load %arg0[%c1] : memref<2xf32, #tpu.memory_space<smem>>
    %c0_0 = arith.constant 0 : index
    %c0_1 = arith.constant 0 : index
    %2 = vector.load %arg1[%c0_0, %c0_1] : memref<1x128xf32, #tpu.memory_space<vmem>>, vector<1x128xf32>
    %3 = vector.broadcast %0 : f32 to vector<1x128xf32>
    %4 = arith.mulf %3, %2 : vector<1x128xf32>
    %5 = math.tanh %4 : vector<1x128xf32>
    %c0_2 = arith.constant 0 : index
    %c0_3 = arith.constant 0 : index
    %6 = vector.load %arg2[%c0_2, %c0_3] : memref<32x128xf32, #tpu.memory_space<vmem>>, vector<32x128xf32>
    %7 = vector.broadcast %1 : f32 to vector<32x128xf32>
    %8 = arith.mulf %7, %6 : vector<32x128xf32>
    %9 = math.tanh %8 : vector<32x128xf32>
    %c0_4 = arith.constant 0 : index
    %c0_5 = arith.constant 0 : index
    %10 = vector.load %arg3[%c0_4, %c0_5] : memref<32x128xf32, #tpu.memory_space<vmem>>, vector<32x128xf32>
    %11 = vector.broadcast %5 : vector<1x128xf32> to vector<32x128xf32>
    %12 = arith.addf %11, %9 : vector<32x128xf32>
    %cst = arith.constant 133.333328 : f32
    %13 = vector.broadcast %cst : f32 to vector<32x128xf32>
    %14 = arith.mulf %13, %12 : vector<32x128xf32>
    %15 = arith.addf %10, %14 : vector<32x128xf32>
    %c0_6 = arith.constant 0 : index
    %c0_7 = arith.constant 0 : index
    %16 = vector.load %arg4[%c0_6, %c0_7] : memref<32x128xf32, #tpu.memory_space<vmem>>, vector<32x128xf32>
    tpu.vector_store %arg4[%c0_6, %c0_7], %15 {strides = array<i32>} : memref<32x128xf32, #tpu.memory_space<vmem>>, vector<32x128xf32>,
    return
  }
}

</mosaic_0001>

<llo_original>
// kernel: tpu_custom_call.1
$region0: #{tpu_custom_call.1}
  #allocation0 [shape = 'u32[]', space=smem, size = 0x4, offset = 0x4, fixed_abs, tag = 'smem constant byte address 0x4 - core index']
  #allocation1 [shape = 'u32[144,128]{1,0:T(1,128)}', space=vmem, size = 0x12000, scoped, tag = 'internal scratch']
  %s0 = inlined_call_operand.hbm [shape: f32[2], index: 0, kind: input, shape index: {}]
  %s1 = inlined_call_operand.vmem [shape: f32[1,128], index: 1, kind: input, shape index: {}]
  %s2 = inlined_call_operand.hbm [shape: f32[32,128], index: 2, kind: input, shape index: {}]
  %s3 = inlined_call_operand.hbm [shape: f32[32,128], index: 3, kind: input, shape index: {}]
  %s4 = inlined_call_operand.hbm [shape: f32[32,128], index: 4, kind: output, shape index: {}]
  %s5 = sld [smem:[#allocation0]]
  $region38: #{tpu_custom_call.1} parent=0
    _
  %s7 = ssub.s32 1, %s5
  %s8 = scalar_select 0, %s7, %s5
  $region1: #{tpu_custom_call.1} parent=0
    #allocation2 [shape = 'u8[512]{0}', space=smem, size = 0x200, scoped, tag = 'input window, operand 0, single buffered']
    #allocation3 [shape = 's32[1]{0}', space=sflag, size = 0x4, scoped, tag = 'scoped memory for tpu_custom_call.1']
    #allocation4 [shape = 's32[1]{0}', space=sflag, size = 0x4, scoped, tag = 'scoped memory for tpu_custom_call.1']
    #allocation5 [shape = 's32[1]{0}', space=sflag, size = 0x4, scoped, tag = 'scoped memory for tpu_custom_call.1']
    #allocation6 [shape = 'u8[16384]{0}', space=vmem, size = 0x4000, scoped, tag = 'input window, operand 2, single buffered']
    #allocation7 [shape = 'u8[16384]{0}', space=vmem, size = 0x4000, scoped, tag = 'input window, operand 3, single buffered']
    #allocation8 [shape = 's32[1]{0}', space=sflag, size = 0x4, scoped, tag = 'scoped memory for tpu_custom_call.1']
    #allocation9 [shape = 'u8[16384]{0}', space=vmem, size = 0x4000, scoped, tag = 'output window, operand 0, single buffered']
    %9 = vsyncpa [#allocation5], 0
    %10 = vsyncpa [#allocation3], 0
    %11 = vsyncpa [#allocation8], 0
    %12 = vsyncpa [#allocation4], 0
    // Predicated region
    $region2: #{tpu_custom_call.1} parent=1 // pred_check
      _
    $region3: #{tpu_custom_call.1} parent=1 // pred_check_branch
      %14 = sbr.rel (0) target = $region5
    $region4: #{tpu_custom_call.1} parent=1 // pred_region
      %s16 = ssub.s32 16, 16
      %17 = vsyncadd [#allocation5], %s16
      %20 = dma.hbm_to_smem %s0, 16, [#allocation2], [#allocation5]
    $region5: #{tpu_custom_call.1} parent=1 // pred_fallthru
      _
    // Predicated region
    $region6: #{tpu_custom_call.1} parent=1 // pred_check
      _
    $region7: #{tpu_custom_call.1} parent=1 // pred_check_branch
      %22 = sbr.rel (0) target = $region9
    $region8: #{tpu_custom_call.1} parent=1 // pred_region
      _
    $region9: #{tpu_custom_call.1} parent=1 // pred_fallthru
      _
    // Predicated region
    $region10: #{tpu_custom_call.1} parent=1 // pred_check
      _
    $region11: #{tpu_custom_call.1} parent=1 // pred_check_branch
      %24 = sbr.rel (0) target = $region13
    $region12: #{tpu_custom_call.1} parent=1 // pred_region
      %s26 = ssub.s32 512, 512
      %27 = vsyncadd [#allocation3], %s26
      %s28 = sshll.u32 [#allocation6], 4
      %s29 = int_to_ptr.vmem [resolvable:$true] %s28
      %34 = dma.hbm_to_vmem [thread:$0]  %s2, 512, %s29, [#allocation3], 128, 128, 8
    $region13: #{tpu_custom_call.1} parent=1 // pred_fallthru
      _
    // Predicated region
    $region14: #{tpu_custom_call.1} parent=1 // pred_check
      _
    $region15: #{tpu_custom_call.1} parent=1 // pred_check_branch
      %36 = sbr.rel (0) target = $region17
    $region16: #{tpu_custom_call.1} parent=1 // pred_region
      %s38 = ssub.s32 512, 512
      %39 = vsyncadd [#allocation8], %s38
      %s40 = sshll.u32 [#allocation7], 4
      %s41 = int_to_ptr.vmem [resolvable:$true] %s40
      %46 = dma.hbm_to_vmem [thread:$0]  %s3, 512, %s41, [#allocation8], 128, 128, 8
    $region17: #{tpu_custom_call.1} parent=1 // pred_fallthru
      _
    // Predicated region
    $region18: #{tpu_custom_call.1} parent=1 // pred_check
      _
    $region19: #{tpu_custom_call.1} parent=1 // pred_check_branch
      %48 = sbr.rel (0) target = $region21
    $region20: #{tpu_custom_call.1} parent=1 // pred_region
      %49 = dma.done [#allocation5], 16
    $region21: #{tpu_custom_call.1} parent=1 // pred_fallthru
      _
    // Predicated region
    $region22: #{tpu_custom_call.1} parent=1 // pred_check
      _
    $region23: #{tpu_custom_call.1} parent=1 // pred_check_branch
      %51 = sbr.rel (0) target = $region25
    $region24: #{tpu_custom_call.1} parent=1 // pred_region
      %52 = dma.done [#allocation3], 512
    $region25: #{tpu_custom_call.1} parent=1 // pred_fallthru
      _
    // Predicated region
    $region26: #{tpu_custom_call.1} parent=1 // pred_check
      _
    $region27: #{tpu_custom_call.1} parent=1 // pred_check_branch
      %54 = sbr.rel (0) target = $region29
    $region28: #{tpu_custom_call.1} parent=1 // pred_region
      %55 = dma.done [#allocation8], 512
    $region29: #{tpu_custom_call.1} parent=1 // pred_fallthru
      _
    %56 = sfence
    %s57 = sld [smem:[#allocation2]]
    %s58 = sld [smem:[#allocation2 + $0x1]]
    %v59 = vld [vmem:[%s1] sm:$0x1]
    %v60 = vstv %s57
    %v61 = vmul.f32 %v60, %v59
    %v62 = vtanh.pop %v61
    %v63 = vld [vmem:[#allocation6] sm:$0xff]
    %v64 = vld [vmem:[#allocation6 + $0x8] sm:$0xff]
    %v65 = vld [vmem:[#allocation6 + $0x10] sm:$0xff]
    %v66 = vld [vmem:[#allocation6 + $0x18] sm:$0xff]
    %v67 = vstv %s58
    %v68 = vmul.f32 %v67, %v63
    %v69 = vmul.f32 %v67, %v64
    %v70 = vmul.f32 %v67, %v65
    %v71 = vmul.f32 %v67, %v66
    %v72 = vtanh.pop %v68
    %v73 = vtanh.pop %v69
    %v74 = vtanh.pop %v70
    %v75 = vtanh.pop %v71
    %v76 = vld [vmem:[#allocation7] sm:$0xff]
    %v77 = vld [vmem:[#allocation7 + $0x8] sm:$0xff]
    %v78 = vld [vmem:[#allocation7 + $0x10] sm:$0xff]
    %v79 = vld [vmem:[#allocation7 + $0x18] sm:$0xff]
    %v81 = vlaneseq
    %v82 = vshrl.u32 %v81, 7
    %v83 = vsub.s32 0, %v82
    %v84 = vrot.slane %v62, %v83
    %v86 = vadd.f32 %v84, %v72
    %v87 = vadd.f32 %v84, %v73
    %v88 = vadd.f32 %v84, %v74
    %v89 = vadd.f32 %v84, %v75
    %v90 = vmul.f32 %v86, 133.33333
    %v91 = vmul.f32 %v87, 133.33333
    %v92 = vmul.f32 %v88, 133.33333
    %v93 = vmul.f32 %v89, 133.33333
    %v94 = vadd.f32 %v76, %v90
    %v95 = vadd.f32 %v77, %v91
    %v96 = vadd.f32 %v78, %v92
    %v97 = vadd.f32 %v79, %v93
    %98 = vst [vmem:[#allocation9] sm:$0xff] %v94
    %99 = vst [vmem:[#allocation9 + $0x8] sm:$0xff] %v95
    %100 = vst [vmem:[#allocation9 + $0x10] sm:$0xff] %v96
    %101 = vst [vmem:[#allocation9 + $0x18] sm:$0xff] %v97
    // Predicated region
    $region30: #{tpu_custom_call.1} parent=1 // pred_check
      _
    $region31: #{tpu_custom_call.1} parent=1 // pred_check_branch
      %103 = sbr.rel (0) target = $region33
    $region32: #{tpu_custom_call.1} parent=1 // pred_region
      %s105 = ssub.s32 512, 512
      %106 = vsyncadd [#allocation4], %s105
      %s107 = sshll.u32 [#allocation9], 4
      %s108 = int_to_ptr.vmem [resolvable:$true] %s107
      %113 = dma.vmem_to_hbm [thread:$0]  %s108, 512, %s4, [#allocation4], 128, 128, 8
    $region33: #{tpu_custom_call.1} parent=1 // pred_fallthru
      _
    // Predicated region
    $region34: #{tpu_custom_call.1} parent=1 // pred_check
      _
    $region35: #{tpu_custom_call.1} parent=1 // pred_check_branch
      %115 = sbr.rel (0) target = $region37
    $region36: #{tpu_custom_call.1} parent=1 // pred_region
      %116 = dma.done [#allocation4], 512
    $region37: #{tpu_custom_call.1} parent=1 // pred_fallthru
      _
    %117 = vsyncpa [#allocation3], 1
    %118 = vsyncpa [#allocation8], 1
    %119 = vsyncpa [#allocation4], 1
    %120 = vsyncpa [#allocation5], 1

</llo_original>
